<compile_context>
chip_gen: v7x
topology: tpu7x:2x2x1
jax: 0.10.0
libtpu: 0.0.40
codegen_flags: <defaults>
</compile_context>

<pallas_src>
import functools
import math

import numpy as np
import jax
import jax.numpy as jnp
from jax import lax
from jax.experimental import pallas as pl
from jax.experimental.pallas import tpu as pltpu

EPS = 1e-5  # PyTorch BatchNorm2d default


# -----------------------------------------------------------------------------
# Small helpers
# -----------------------------------------------------------------------------
@functools.lru_cache(maxsize=1)
def _roll_mode():
    """One-time cached probe: can pltpu.roll do sublane (axis-0) rolls here, and
    with which sign convention?  Falls back to slice+concat if unsupported."""
    x = np.arange(8 * 128, dtype=np.float32).reshape(8, 128)

    def k(x_ref, o_ref):
        o_ref[...] = pltpu.roll(x_ref[...], 1, 0)

    try:
        y = np.asarray(pl.pallas_call(
            k, out_shape=jax.ShapeDtypeStruct((8, 128), jnp.float32))(jnp.asarray(x)))
    except Exception:
        return "concat"
    if np.array_equal(y, np.roll(x, 1, axis=0)):
        return "roll_pos"      # pltpu.roll(a, k) == jnp.roll(a, k)
    if np.array_equal(y, np.roll(x, -1, axis=0)):
        return "roll_neg"      # pltpu.roll(a, k) == jnp.roll(a, -k)
    return "concat"


def _shift_rows(a, k, mode):
    """Circular shift of rows toward lower indices by k (row i <- row i+k)."""
    n = a.shape[0]
    if mode == "roll_pos":
        return pltpu.roll(a, n - k, 0)     # XLU rotate, no VMEM copy
    if mode == "roll_neg":
        return pltpu.roll(a, k, 0)
    return jnp.concatenate([a[k:, :], a[:k, :]], axis=0)


def _vmem_capacity_bytes(default=64 << 20):
    try:
        return int(getattr(pltpu.get_tpu_info(), "vmem_capacity_bytes", default))
    except Exception:
        return default          # conservative (v7x per-TC capacity)


def _valid_mask(tile_rows, valid_rows):
    """f32 (tile_rows, 1) mask of rows belonging to real (un-padded) images."""
    if valid_rows is None:
        return None
    gid = pl.program_id(0) * tile_rows + lax.broadcasted_iota(
        jnp.int32, (tile_rows, 1), 0)
    return (gid < valid_rows).astype(jnp.float32)


def _col_stats(y, valid):
    """Per-column (sum, sum-of-squares) of a (rows, C) f32 tile -> (1, 2, C)."""
    if valid is not None:
        y = y * valid
    s = jnp.sum(y, axis=0, keepdims=True)
    ss = jnp.sum(y * y, axis=0, keepdims=True)
    return jnp.concatenate([s, ss], axis=0).reshape(1, 2, -1)


# -----------------------------------------------------------------------------
# Kernels (1-D grid of row tiles; a tile = whole image(s)).
# -----------------------------------------------------------------------------
def conv1_kernel(x_ref, w_ref, y_ref, st_ref):
    # 1x1 conv (bias folded away by the following training-mode BN) + BN1 stats.
    # Pad input rows are zero, so they contribute nothing to the stats (no bias).
    y = jnp.dot(x_ref[...], w_ref[...], preferred_element_type=jnp.float32)
    y_ref[...] = y.astype(y_ref.dtype)
    st_ref[...] = _col_stats(y, None)


def deconv_kernel(y1_ref, sc_ref, sh_ref, msk_ref, w2f_ref, y2_ref, st_ref, *,
                  W, tile_rows, valid_rows, roll_mode):
    # BN1+ReLU as one f32 FMA (f32 VALU also on v5e), then ConvTranspose2d
    # (3, stride=2, pad=1, out_pad=1) as a single MXU call producing the four
    # output parities lane-dense: (TM, 4*C4).
    h = jnp.maximum(y1_ref[...].astype(jnp.float32) * sc_ref[...] + sh_ref[...], 0.0)

    # Neighbour rows via circular in-tile shifts (XLU roll); the wrapped rows are
    # zeroed by the hoisted per-tile boundary masks (incl. cross-image rows).
    z_w = _shift_rows(h, 1, roll_mode) * msk_ref[:, 0:1]           # x[i, j+1]
    z_h = _shift_rows(h, W, roll_mode) * msk_ref[:, 1:2]           # x[i+1, j]
    z_hw = _shift_rows(h, W + 1, roll_mode) * msk_ref[:, 2:3]      # x[i+1, j+1]

    h_cat = jnp.concatenate([h, z_w, z_h, z_hw], axis=1).astype(w2f_ref.dtype)
    y2 = jnp.dot(h_cat, w2f_ref[...], preferred_element_type=jnp.float32)
    y2_ref[...] = y2.astype(y2_ref.dtype)
    st_ref[...] = _col_stats(y2, _valid_mask(tile_rows, valid_rows))


def conv3_kernel(y2_ref, sc_ref, sh_ref, w3_ref, y3_ref, st_ref, *,
                 tile_rows, valid_rows):
    # BN2+ReLU as one f32 FMA, then the 1x1 conv applied per parity through a
    # block-diagonal weight so the output stays lane-dense: (TM, 4*Cout).
    h = jnp.maximum(y2_ref[...].astype(jnp.float32) * sc_ref[...] + sh_ref[...], 0.0)
    y3 = jnp.dot(h.astype(w3_ref.dtype), w3_ref[...],
                 preferred_element_type=jnp.float32)
    y3_ref[...] = y3.astype(y3_ref.dtype)
    st_ref[...] = _col_stats(y3, _valid_mask(tile_rows, valid_rows))


def bn_relu_kernel(y_ref, sc_ref, sh_ref, o_ref):
    o_ref[...] = jnp.maximum(
        y_ref[...].astype(jnp.float32) * sc_ref[...] + sh_ref[...], 0.0
    ).astype(o_ref.dtype)


# -----------------------------------------------------------------------------
# Wrapper
# -----------------------------------------------------------------------------
def _scale_shift(stats, count, gamma, beta, *, phases=1):
    """Fold training-mode BN (batch stats, biased var) + affine into scale/shift."""
    s = jnp.sum(stats, axis=0)                        # (2, phases*C)
    if phases > 1:
        c = s.shape[1] // phases
        s = s.reshape(2, phases, c).sum(axis=1)       # per-channel across parities
        count = count * phases
    mean = s[0] / count
    var = jnp.maximum(s[1] / count - mean * mean, 0.0)
    scale = gamma.astype(jnp.float32) * lax.rsqrt(var + EPS)
    shift = beta.astype(jnp.float32) - mean * scale
    if phases > 1:
        scale = jnp.tile(scale, (phases,))
        shift = jnp.tile(shift, (phases,))
    return scale.reshape(1, -1), shift.reshape(1, -1)


def decoder_block(x_nchw, params, *, act_dtype=jnp.bfloat16, target_rows=2048):
    """Pallas implementation of DecoderBlock.forward. Input/output are NCHW f32."""
    (w1_pt, _b1, g1, be1,
     wd_pt, _bd, g2, be2,
     w3_pt, _b3, g3, be3) = params
    # The conv/deconv biases are mathematically cancelled by the training-mode
    # BatchNorm mean subtraction that follows each layer, so they are unused.
    # TODO(synk): restore the biases if eval-mode (running-stats) BN is needed.

    N, Cin, H, W = x_nchw.shape
    C4 = w1_pt.shape[0]
    Cout = w3_pt.shape[0]
    hw = H * W
    M = N * hw
    f32 = jnp.float32
    act_b = jnp.dtype(act_dtype).itemsize

    # ---- VMEM budget & tile sizing ------------------------------------------
    vmem_limit = min(96 << 20, max(16 << 20, int(0.6 * _vmem_capacity_bytes())))
    # Conservative per-row VMEM bytes of the heaviest stage (double-buffered I/O
    # plus f32 temporaries); used to cap the row-tile size.
    row_bytes = 2 * act_b * (Cin + 9 * C4 + 8 * Cout) + 4 * (10 * C4 + 4 * Cout) + 16
    tgt = max(8, min(target_rows, (vmem_limit // 2) // row_bytes))

    # Whole images per tile so the transposed-conv neighbourhood never crosses a
    # tile; `align` keeps tile_rows a multiple of 8 (sublane constraint).
    align = 8 // math.gcd(hw, 8)
    ipt = max(align, (tgt // hw) // align * align)
    # Guarantee >= 2 tiles (v7x megacore sharding + SW pipelining) when possible.
    while ipt > align and -(-N // ipt) < 2:
        ipt -= align
    Np = -(-N // ipt) * ipt            # image count padded up to the tile multiple
    tile_rows = ipt * hw
    num_tiles = Np // ipt
    Mp = Np * hw
    valid_rows = None if Mp == M else M
    # TODO(synk): if one image alone exceeds the VMEM budget, split images across
    # tiles with halo rows instead of whole-image tiles.

    # ---- input rows (NCHW -> NHWC rows) --------------------------------------
    # TODO(synk): if the surrounding graph is NHWC, drop this transpose and the one
    # at the end (saves ~2 HBM round trips); or fold them into stages 1 and 4.
    x2d = jnp.transpose(x_nchw, (0, 2, 3, 1)).reshape(M, Cin).astype(f32)
    if Mp != M:
        x2d = jnp.pad(x2d, ((0, Mp - M), (0, 0)))
    x2d = x2d.astype(act_dtype)

    # ---- hoisted per-tile boundary masks (identical for every tile) ----------
    ridx = jnp.arange(tile_rows, dtype=jnp.int32)
    jj = ridx % W
    ii = (ridx // W) % H
    bmask = jnp.stack([jj < W - 1, ii < H - 1, (jj < W - 1) & (ii < H - 1)],
                      axis=1).astype(f32)                         # (tile_rows, 3)

    # ---- weights in kernel layout (tiny, built once in the wrapper) ----------
    w1 = jnp.transpose(w1_pt[:, :, 0, 0]).astype(act_dtype)       # (Cin, C4)

    tap = lambda kh, kw: wd_pt[:, :, kh, kw].astype(f32)          # (C4 in, C4 out)
    zz = jnp.zeros((C4, C4), f32)
    # Fused phase weight: row groups = [h | x(i,j+1) | x(i+1,j) | x(i+1,j+1)],
    # column groups = output parities [ee | eo | oe | oo].
    w2f = jnp.concatenate([
        jnp.concatenate([tap(1, 1), tap(1, 2), tap(2, 1), tap(2, 2)], axis=1),
        jnp.concatenate([zz,        tap(1, 0), zz,        tap(2, 0)], axis=1),
        jnp.concatenate([zz,        zz,        tap(0, 1), tap(0, 2)], axis=1),
        jnp.concatenate([zz,        zz,        zz,        tap(0, 0)], axis=1),
    ], axis=0).astype(act_dtype)                                  # (4*C4, 4*C4)
    # TODO(synk): for C4 >= 128 accumulate per-row-group dots instead and skip the
    # 7 zero blocks (~44% of the MXU FLOPs of the fused form).

    w3 = jnp.transpose(w3_pt[:, :, 0, 0]).astype(f32)             # (C4, Cout)
    w3blk = jnp.kron(jnp.eye(4, dtype=f32), w3).astype(act_dtype)  # (4*C4, 4*Cout)
    # TODO(synk): for C4, Cout >= 128 use 4 per-parity dots into column slices of
    # y3 instead of the 75%-zero block-diagonal weight.

    # TODO(synk): when channels are well below 128 in production, fold W (or a
    # factor) into the lane axis so the stores are lane-dense (>=128 wide).

    # ---- specs ----------------------------------------------------------------
    row_spec = lambda c: pl.BlockSpec((tile_rows, c), lambda t: (t, 0))
    full_spec = lambda shape: pl.BlockSpec(shape, lambda t: (0,) * len(shape))
    st_spec = lambda c: pl.BlockSpec((1, 2, c), lambda t: (t, 0, 0))
    st_shape = lambda c: jax.ShapeDtypeStruct((num_tiles, 2, c), f32)
    cparams = pltpu.CompilerParams(dimension_semantics=("parallel",),
                                   vmem_limit_bytes=int(vmem_limit))
    # TODO(synk): sweep pipeline_mode=pl.Buffered(3) on the FMA-only stages (1 & 4).

    roll_mode = _roll_mode()

    # ---- stage 1: conv1 (1x1) + BN1 partial stats -----------------------------
    y1, st1 = pl.pallas_call(
        conv1_kernel,
        grid=(num_tiles,),
        in_specs=[row_spec(Cin), full_spec((Cin, C4))],
        out_specs=[row_spec(C4), st_spec(C4)],
        out_shape=[jax.ShapeDtypeStruct((Mp, C4), act_dtype), st_shape(C4)],
        compiler_params=cparams,
    )(x2d, w1)
    sc1, sh1 = _scale_shift(st1, M, g1, be1)

    # ---- stage 2: BN1+ReLU + fused ConvTranspose2d + BN2 partial stats --------
    y2, st2 = pl.pallas_call(
        functools.partial(deconv_kernel, W=W, tile_rows=tile_rows,
                          valid_rows=valid_rows, roll_mode=roll_mode),
        grid=(num_tiles,),
        in_specs=[row_spec(C4), full_spec((1, C4)), full_spec((1, C4)),
                  full_spec((tile_rows, 3)), full_spec((4 * C4, 4 * C4))],
        out_specs=[row_spec(4 * C4), st_spec(4 * C4)],
        out_shape=[jax.ShapeDtypeStruct((Mp, 4 * C4), act_dtype), st_shape(4 * C4)],
        compiler_params=cparams,
    )(y1, sc1, sh1, bmask, w2f)
    sc2, sh2 = _scale_shift(st2, M, g2, be2, phases=4)

    # ---- stage 3: BN2+ReLU + conv3 (1x1, block-diagonal) + BN3 partial stats --
    y3, st3 = pl.pallas_call(
        functools.partial(conv3_kernel, tile_rows=tile_rows, valid_rows=valid_rows),
        grid=(num_tiles,),
        in_specs=[row_spec(4 * C4), full_spec((1, 4 * C4)), full_spec((1, 4 * C4)),
                  full_spec((4 * C4, 4 * Cout))],
        out_specs=[row_spec(4 * Cout), st_spec(4 * Cout)],
        out_shape=[jax.ShapeDtypeStruct((Mp, 4 * Cout), act_dtype),
                   st_shape(4 * Cout)],
        compiler_params=cparams,
    )(y2, sc2, sh2, w3blk)
    sc3, sh3 = _scale_shift(st3, M, g3, be3, phases=4)

    # ---- stage 4: BN3 + ReLU ---------------------------------------------------
    out2d = pl.pallas_call(
        bn_relu_kernel,
        grid=(num_tiles,),
        in_specs=[row_spec(4 * Cout), full_spec((1, 4 * Cout)),
                  full_spec((1, 4 * Cout))],
        out_specs=row_spec(4 * Cout),
        out_shape=jax.ShapeDtypeStruct((Mp, 4 * Cout), f32),
        compiler_params=cparams,
    )(y3, sc3, sh3)

    # Lane-dense (M, 4*Cout) -> NCHW; the parity de-interleave is reshape glue.
    # TODO(synk): fold this de-interleave + NHWC->NCHW into stage 4's out_spec.
    t = out2d[:M].reshape(N, H, W, 2, 2, Cout)
    t = jnp.transpose(t, (0, 1, 3, 2, 4, 5))        # (N, H, 2, W, 2, Cout)
    y = t.reshape(N, 2 * H, 2 * W, Cout)
    return jnp.transpose(y, (0, 3, 1, 2))           # (N, Cout, 2H, 2W)


# ----------------------------- pure-JAX reference ----------------------------
def reference(x_nchw, params):
    (w1_pt, b1, g1, be1,
     wd_pt, bd, g2, be2,
     w3_pt, b3, g3, be3) = params

    def bn_relu(y, g, b):
        mean = jnp.mean(y, axis=(0, 2, 3), keepdims=True)
        var = jnp.mean((y - mean) ** 2, axis=(0, 2, 3), keepdims=True)
        yhat = (y - mean) / jnp.sqrt(var + EPS)
        return jnp.maximum(yhat * g[None, :, None, None] + b[None, :, None, None], 0.0)

    y = jnp.einsum('nchw,oc->nohw', x_nchw, w1_pt[:, :, 0, 0]) + b1[None, :, None, None]
    y = bn_relu(y, g1, be1)

    # ConvTranspose2d == dilated conv with spatially flipped, transposed kernel.
    wc = jnp.transpose(wd_pt, (1, 0, 2, 3))[:, :, ::-1, ::-1]
    y = lax.conv_general_dilated(
        y, wc, window_strides=(1, 1), padding=((1, 2), (1, 2)),
        lhs_dilation=(2, 2), dimension_numbers=('NCHW', 'OIHW', 'NCHW'))
    y = y + bd[None, :, None, None]
    y = bn_relu(y, g2, be2)

    y = jnp.einsum('nchw,oc->nohw', y, w3_pt[:, :, 0, 0]) + b3[None, :, None, None]
    y = bn_relu(y, g3, be3)
    return y


if __name__ == "__main__":
    key = jax.random.PRNGKey(0)
    N, Cin, H, W = 2, 8, 8, 8
    n_filters = 8
    C4 = Cin // 4

    ks = jax.random.split(key, 13)
    x = jax.random.normal(ks[0], (N, Cin, H, W), jnp.float32)

    w1_pt = 0.2 * jax.random.normal(ks[1], (C4, Cin, 1, 1), jnp.float32)
    b1 = 0.1 * jax.random.normal(ks[2], (C4,), jnp.float32)
    g1 = 1.0 + 0.1 * jax.random.normal(ks[3], (C4,), jnp.float32)
    be1 = 0.1 * jax.random.normal(ks[4], (C4,), jnp.float32)

    wd_pt = 0.2 * jax.random.normal(ks[5], (C4, C4, 3, 3), jnp.float32)  # (in, out, kh, kw)
    bd = 0.1 * jax.random.normal(ks[6], (C4,), jnp.float32)
    g2 = 1.0 + 0.1 * jax.random.normal(ks[7], (C4,), jnp.float32)
    be2 = 0.1 * jax.random.normal(ks[8], (C4,), jnp.float32)

    w3_pt = 0.2 * jax.random.normal(ks[9], (n_filters, C4, 1, 1), jnp.float32)
    b3 = 0.1 * jax.random.normal(ks[10], (n_filters,), jnp.float32)
    g3 = 1.0 + 0.1 * jax.random.normal(ks[11], (n_filters,), jnp.float32)
    be3 = 0.1 * jax.random.normal(ks[12], (n_filters,), jnp.float32)

    params = (w1_pt, b1, g1, be1, wd_pt, bd, g2, be2, w3_pt, b3, g3, be3)

    ref = reference(x, params)

    # f32 activations: tight semantic check against the pure-JAX reference.
    out_f32 = jax.block_until_ready(decoder_block(x, params, act_dtype=jnp.float32))
    assert out_f32.shape == (N, n_filters, 2 * H, 2 * W), out_f32.shape
    err32 = float(jnp.max(jnp.abs(out_f32 - ref)))
    assert err32 < 1e-3, f"f32 max abs error too large: {err32}"

    # bf16 activations (default fast path): loose sanity check (bf16 rounding
    # compounds through three BatchNorms).
    out_bf16 = jax.block_until_ready(decoder_block(x, params))
    assert out_bf16.shape == (N, n_filters, 2 * H, 2 * W), out_bf16.shape
    errbf = float(jnp.max(jnp.abs(out_bf16 - ref)))
    assert errbf < 0.5, f"bf16 max abs error too large: {errbf}"

    print("KERNEL_OK")
</pallas_src>

<mosaic_0001>
module attributes {stable_mosaic.version = 11 : i64} {
  func.func @k(%arg0: memref<8x128xf32, #tpu.memory_space<vmem>>, %arg1: memref<8x128xf32, #tpu.memory_space<vmem>>) attributes {dimension_semantics = [], scalar_prefetch = 0 : i64, scratch_operands = 0 : i64, tpu.core_type = #tpu.core_type<tc>} {
    %c0 = arith.constant 0 : index
    %c0_0 = arith.constant 0 : index
    %0 = vector.load %arg0[%c0, %c0_0] : memref<8x128xf32, #tpu.memory_space<vmem>>, vector<8x128xf32>
    %c1_i32 = arith.constant 1 : i32
    %1 = tpu.dynamic_rotate %0 by %c1_i32 dim 0 : vector<8x128xf32>, i32 -> vector<8x128xf32>
    %c0_1 = arith.constant 0 : index
    %c0_2 = arith.constant 0 : index
    %2 = vector.load %arg1[%c0_1, %c0_2] : memref<8x128xf32, #tpu.memory_space<vmem>>, vector<8x128xf32>
    tpu.vector_store %arg1[%c0_1, %c0_2], %1 {strides = array<i32>} : memref<8x128xf32, #tpu.memory_space<vmem>>, vector<8x128xf32>,
    return
  }
}

module attributes {stable_mosaic.version = 11 : i64} {
  func.func @conv1_kernel(%arg0: i32, %arg1: memref<64x8xf32, #tpu.memory_space<vmem>>, %arg2: memref<8x2xf32, #tpu.memory_space<vmem>>, %arg3: memref<64x2xf32, #tpu.memory_space<vmem>>, %arg4: memref<1x2x2xf32, #tpu.memory_space<vmem>>) attributes {dimension_semantics = [#tpu.dimension_semantics<parallel>], iteration_bounds = array<i64: 2>, scalar_prefetch = 0 : i64, scratch_operands = 0 : i64, tpu.core_type = #tpu.core_type<tc>, window_params = [{transform_indices = @transform_0, window_bounds = array<i64: 64, 8>}, {pipeline_mode = #tpu.pipeline_mode<synchronous>, transform_indices = @transform_1, window_bounds = array<i64: 8, 2>}, {transform_indices = @transform_2, window_bounds = array<i64: 64, 2>}, {transform_indices = @transform_3, window_bounds = array<i64: 1, 2, 2>}]} {
    %c0 = arith.constant 0 : index
    %c0_0 = arith.constant 0 : index
    %0 = vector.load %arg1[%c0, %c0_0] : memref<64x8xf32, #tpu.memory_space<vmem>>, vector<64x8xf32>
    %c0_1 = arith.constant 0 : index
    %c0_2 = arith.constant 0 : index
    %1 = vector.load %arg2[%c0_1, %c0_2] : memref<8x2xf32, #tpu.memory_space<vmem>>, vector<8x2xf32>
    %cst = arith.constant dense<0.000000e+00> : vector<64x2xf32>
    %2 = tpu.matmul %0, %1, %cst {dimension_numbers = #tpu.dot_dimension_numbers<[1], [0], [0], [1], [0, 0, 1, 1], [], []>} : vector<64x8xf32>, vector<8x2xf32>, vector<64x2xf32> -> vector<64x2xf32>
    %c0_3 = arith.constant 0 : index
    %c0_4 = arith.constant 0 : index
    %3 = vector.load %arg3[%c0_3, %c0_4] : memref<64x2xf32, #tpu.memory_space<vmem>>, vector<64x2xf32>
    tpu.vector_store %arg3[%c0_3, %c0_4], %2 {strides = array<i32>} : memref<64x2xf32, #tpu.memory_space<vmem>>, vector<64x2xf32>,
    %cst_5 = arith.constant dense<0.000000e+00> : vector<2xf32>
    %4 = vector.multi_reduction <add>, %2, %cst_5 [0] : vector<64x2xf32> to vector<2xf32>
    %5 = vector.shape_cast %4 : vector<2xf32> to vector<1x2xf32>
    %6 = arith.mulf %2, %2 : vector<64x2xf32>
    %cst_6 = arith.constant dense<0.000000e+00> : vector<2xf32>
    %7 = vector.multi_reduction <add>, %6, %cst_6 [0] : vector<64x2xf32> to vector<2xf32>
    %8 = vector.shape_cast %7 : vector<2xf32> to vector<1x2xf32>
    %9 = tpu.concatenate %5, %8 in 0 : vector<1x2xf32>, vector<1x2xf32> -> vector<2x2xf32>
    %10 = vector.shape_cast %9 : vector<2x2xf32> to vector<1x2x2xf32>
    %c0_7 = arith.constant 0 : index
    %c0_8 = arith.constant 0 : index
    %c0_9 = arith.constant 0 : index
    %11 = vector.load %arg4[%c0_7, %c0_8, %c0_9] : memref<1x2x2xf32, #tpu.memory_space<vmem>>, vector<1x2x2xf32>
    tpu.vector_store %arg4[%c0_7, %c0_8, %c0_9], %10 {strides = array<i32>} : memref<1x2x2xf32, #tpu.memory_space<vmem>>, vector<1x2x2xf32>,
    return
  }
  func.func @transform_0(%arg0: i32) -> (i32, i32) {
    %c0_i32 = arith.constant 0 : i32
    %c0_i32_0 = arith.constant 0 : i32
    return %arg0, %c0_i32 : i32, i32
  }
  func.func @transform_1(%arg0: i32) -> (i32, i32) {
    %c0_i32 = arith.constant 0 : i32
    %c0_i32_0 = arith.constant 0 : i32
    %c0_i32_1 = arith.constant 0 : i32
    return %c0_i32, %c0_i32_0 : i32, i32
  }
  func.func @transform_2(%arg0: i32) -> (i32, i32) {
    %c0_i32 = arith.constant 0 : i32
    %c0_i32_0 = arith.constant 0 : i32
    return %arg0, %c0_i32 : i32, i32
  }
  func.func @transform_3(%arg0: i32) -> (i32, i32, i32) {
    %c0_i32 = arith.constant 0 : i32
    %c0_i32_0 = arith.constant 0 : i32
    %c0_i32_1 = arith.constant 0 : i32
    return %arg0, %c0_i32, %c0_i32_0 : i32, i32, i32
  }
}

</mosaic_0001>

<llo_original>
// kernel: tpu_custom_call.1
$region0: #{tpu_custom_call.1}
  #allocation0 [shape = 'u32[]', space=smem, size = 0x4, offset = 0x4, fixed_abs, tag = 'smem constant byte address 0x4 - core index']
  #allocation1 [shape = 'u32[144,128]{1,0:T(1,128)}', space=vmem, size = 0x12000, scoped, tag = 'internal scratch']
  %s0 = inlined_call_operand.hbm [shape: f32[8,128], index: 0, kind: input, shape index: {}]
  %s1 = inlined_call_operand.hbm [shape: f32[8,128], index: 1, kind: output, shape index: {}]
  %s2 = sld [smem:[#allocation0]]
  $region18: #{tpu_custom_call.1} parent=0
    _
  %s4 = ssub.s32 1, %s2
  %s5 = scalar_select 0, %s4, %s2
  $region1: #{tpu_custom_call.1} parent=0
    #allocation2 [shape = 'u8[4096]{0}', space=vmem, size = 0x1000, scoped, tag = 'input window, operand 0, single buffered']
    #allocation3 [shape = 's32[1]{0}', space=sflag, size = 0x4, scoped, tag = 'scoped memory for tpu_custom_call.1']
    #allocation4 [shape = 's32[1]{0}', space=sflag, size = 0x4, scoped, tag = 'scoped memory for tpu_custom_call.1']
    #allocation5 [shape = 'u8[4096]{0}', space=vmem, size = 0x1000, scoped, tag = 'output window, operand 0, single buffered']
    %6 = vsyncpa [#allocation3], 0
    %7 = vsyncpa [#allocation4], 0
    // Predicated region
    $region2: #{tpu_custom_call.1} parent=1 // pred_check
      _
    $region3: #{tpu_custom_call.1} parent=1 // pred_check_branch
      %9 = sbr.rel (0) target = $region5
    $region4: #{tpu_custom_call.1} parent=1 // pred_region
      %s11 = ssub.s32 128, 128
      %12 = vsyncadd [#allocation3], %s11
      %s14 = sshll.u32 [#allocation2], 4
      %s15 = int_to_ptr.vmem [resolvable:$true] %s14
      %17 = dma.hbm_to_vmem [thread:$0]  %s0, 128, %s15, [#allocation3]
    $region5: #{tpu_custom_call.1} parent=1 // pred_fallthru
      _
    // Predicated region
    $region6: #{tpu_custom_call.1} parent=1 // pred_check
      _
    $region7: #{tpu_custom_call.1} parent=1 // pred_check_branch
      %19 = sbr.rel (0) target = $region9
    $region8: #{tpu_custom_call.1} parent=1 // pred_region
      %20 = dma.done [#allocation3], 128
    $region9: #{tpu_custom_call.1} parent=1 // pred_fallthru
      _
    %v21 = vld [vmem:[#allocation2] sm:$0xff]
    %v22 = vrot.slane %v21, 7
    %23 = vst [vmem:[#allocation5] sm:$0xff] %v22
    // Predicated region
    $region10: #{tpu_custom_call.1} parent=1 // pred_check
      _
    $region11: #{tpu_custom_call.1} parent=1 // pred_check_branch
      %25 = sbr.rel (0) target = $region13
    $region12: #{tpu_custom_call.1} parent=1 // pred_region
      %s27 = ssub.s32 128, 128
      %28 = vsyncadd [#allocation4], %s27
      %s30 = sshll.u32 [#allocation5], 4
      %s31 = int_to_ptr.vmem [resolvable:$true] %s30
      %33 = dma.vmem_to_hbm [thread:$0]  %s31, 128, %s1, [#allocation4]
    $region13: #{tpu_custom_call.1} parent=1 // pred_fallthru
      _
    // Predicated region
    $region14: #{tpu_custom_call.1} parent=1 // pred_check
      _
    $region15: #{tpu_custom_call.1} parent=1 // pred_check_branch
      %35 = sbr.rel (0) target = $region17
    $region16: #{tpu_custom_call.1} parent=1 // pred_region
      %36 = dma.done [#allocation4], 128
    $region17: #{tpu_custom_call.1} parent=1 // pred_fallthru
      _
    %37 = vsyncpa [#allocation3], 1
    %38 = vsyncpa [#allocation4], 1

// kernel: tpu_custom_call.1
$region0: #{tpu_custom_call.1}
  #allocation0 [shape = 'u32[]', space=smem, size = 0x4, offset = 0x4, fixed_abs, tag = 'smem constant byte address 0x4 - core index']
  #allocation1 [shape = 'u32[144,128]{1,0:T(1,128)}', space=vmem, size = 0x12000, scoped, tag = 'internal scratch']
  %s0 = inlined_call_operand.vmem [shape: f32[128,8], index: 0, kind: input, shape index: {}]
  %s1 = inlined_call_operand.vmem [shape: f32[8,2], index: 1, kind: input, shape index: {}]
  %s2 = inlined_call_operand.vmem [shape: f32[128,2], index: 2, kind: output, shape index: {0}]
  %s3 = inlined_call_operand.hbm [shape: f32[2,2,2], index: 3, kind: output, shape index: {1}]
  %4 = xla_tuple %s2, %s3
  %s5 = sld [smem:[#allocation0]]
  $region49: #{tpu_custom_call.1} parent=0
    _
  %s7 = ssub.s32 1, %s5
  %s8 = scalar_select 0, %s7, %s5
  $region1: #{tpu_custom_call.1} parent=0
    #allocation2 [shape = 'u8[2048]{0}', space=vmem, size = 0x800, scoped, tag = 'output window, operand 1']
    #allocation3 [shape = 's32[2]{0}', space=sflag, size = 0x8, scoped, tag = 'scoped memory for tpu_custom_call.1']
    %9 = vsyncpa [#allocation3], 0
    %s10 = scalar_lea.sflag [#allocation3], 1
    %11 = vsyncpa %s10, 0
    loop: start=0, step=1, limit=4
    $region2: #{tpu_custom_call.1} parent=1 // loop_pre_header
      _
    $region3: #{tpu_custom_call.1} parent=1 // loop_header
      %s13 = sphi 0, %s17
      %p14 = scmp.ge.s32.totalorder %s13, 4
      %s23 = sphi 0, %s25
      %s26 = sphi 0, %s23
      %s27 = sphi 0, %s26
      %s43 = sphi 0, %s27
      %s47 = sphi 0, %s47
      %s49 = sphi 0, %s47
      %s50 = sphi 0, %s49
      %s64 = sphi 0, %s50
      %s70 = sphi 0, %s72
      %s73 = sphi 0, %s70
      %s74 = sphi 0, %s73
      %s90 = sphi 0, %s74
      %s96 = sphi 0, %s98
      %s99 = sphi 0, %s96
      %s100 = sphi 0, %s99
      %s116 = sphi 0, %s100
    $region4: #{tpu_custom_call.1} parent=1 // loop_header_branch
      %16 = sbr.rel (%p14) target = $region8
    $region5: #{tpu_custom_call.1} parent=1 // loop_body
      %s18 = ssub.s32 %s13, 1
      %s19 = ssub.s32 %s13, 2
      %s20 = sadd.s32 %s13, 1
      %s21 = ssub.s32 %s13, %s20
      %p22 = scmp.eq.s32.totalorder %s21, 0
      %s24 = sadd.s32 %s23, 1
      %s25 = scalar_select %p22, %s23, %s24
      %p28 = pneg %p22
      %p29 = scmp.eq.s32.totalorder %s13, 1
      %p30 = por %p28, %p29
      %p31 = scmp.ne.s32.totalorder %s23, %s26
      %p32 = scmp.eq.s32.totalorder %s13, 0
      %p33 = por %p31, %p32
      %p34 = scmp.ne.s32.totalorder %s23, %s26
      %p35 = scmp.eq.s32.totalorder %s18, 1
      %p36 = por %p34, %p35
      %p37 = scmp.ne.s32.totalorder %s26, %s27
      %p38 = scmp.eq.s32.totalorder %s18, 0
      %p39 = por %p37, %p38
      %p40 = scmp.ne.s32.totalorder %s26, %s27
      %p41 = scmp.eq.s32.totalorder %s19, 1
      %p42 = por %p40, %p41
      %p44 = scmp.ne.s32.totalorder %s27, %s43
      %p45 = scmp.eq.s32.totalorder %s19, 0
      %p46 = por %p44, %p45
      %s48 = sadd.s32 %s47, 1
      %p51 = scmp.eq.s32.totalorder %s13, 1
      %p52 = scmp.ne.s32.totalorder %s47, %s49
      %p53 = scmp.eq.s32.totalorder %s13, 0
      %p54 = por %p52, %p53
      %p55 = scmp.ne.s32.totalorder %s47, %s49
      %p56 = scmp.eq.s32.totalorder %s18, 1
      %p57 = por %p55, %p56
      %p58 = scmp.ne.s32.totalorder %s49, %s50
      %p59 = scmp.eq.s32.totalorder %s18, 0
      %p60 = por %p58, %p59
      %p61 = scmp.ne.s32.totalorder %s49, %s50
      %p62 = scmp.eq.s32.totalorder %s19, 1
      %p63 = por %p61, %p62
      %p65 = scmp.ne.s32.totalorder %s50, %s64
      %p66 = scmp.eq.s32.totalorder %s19, 0
      %p67 = por %p65, %p66
      %s68 = ssub.s32 %s13, %s20
      %p69 = scmp.eq.s32.totalorder %s68, 0
      %s71 = sadd.s32 %s70, 1
      %s72 = scalar_select %p69, %s70, %s71
      %p75 = pneg %p69
      %p76 = scmp.eq.s32.totalorder %s13, 1
      %p77 = por %p75, %p76
      %p78 = scmp.ne.s32.totalorder %s70, %s73
      %p79 = scmp.eq.s32.totalorder %s13, 0
      %p80 = por %p78, %p79
      %p81 = scmp.ne.s32.totalorder %s70, %s73
      %p82 = scmp.eq.s32.totalorder %s18, 1
      %p83 = por %p81, %p82
      %p84 = scmp.ne.s32.totalorder %s73, %s74
      %p85 = scmp.eq.s32.totalorder %s18, 0
      %p86 = por %p84, %p85
      %p87 = scmp.ne.s32.totalorder %s73, %s74
      %p88 = scmp.eq.s32.totalorder %s19, 1
      %p89 = por %p87, %p88
      %p91 = scmp.ne.s32.totalorder %s74, %s90
      %p92 = scmp.eq.s32.totalorder %s19, 0
      %p93 = por %p91, %p92
      %s94 = ssub.s32 %s13, %s20
      %p95 = scmp.eq.s32.totalorder %s94, 0
      %s97 = sadd.s32 %s96, 1
      %s98 = scalar_select %p95, %s96, %s97
      %p101 = pneg %p95
      %p102 = scmp.eq.s32.totalorder %s13, 1
      %p103 = por %p101, %p102
      %p104 = scmp.ne.s32.totalorder %s96, %s99
      %p105 = scmp.eq.s32.totalorder %s13, 0
      %p106 = por %p104, %p105
      %p107 = scmp.ne.s32.totalorder %s96, %s99
      %p108 = scmp.eq.s32.totalorder %s18, 1
      %p109 = por %p107, %p108
      %p110 = scmp.ne.s32.totalorder %s99, %s100
      %p111 = scmp.eq.s32.totalorder %s18, 0
      %p112 = por %p110, %p111
      %p113 = scmp.ne.s32.totalorder %s99, %s100
      %p114 = scmp.eq.s32.totalorder %s19, 1
      %p115 = por %p113, %p114
      %p117 = scmp.ne.s32.totalorder %s100, %s116
      %p118 = scmp.eq.s32.totalorder %s19, 0
      %p119 = por %p117, %p118
      %p120 = scmp.le.s32.totalorder 1, %s13
      %p121 = scmp.lt.s32.totalorder %s13, 3
      %p122 = pnand %p120, %p121
      %p123 = pneg %p122
      // Predicated region
      $region9: #{tpu_custom_call.1} parent=5 // pred_check
        _
      $region10: #{tpu_custom_call.1} parent=5 // pred_check_branch
        %125 = sbr.rel (%p122) target = $region12
      $region11: #{tpu_custom_call.1} parent=5 // pred_region
        %s126 = ssub.s32 %s13, 1
        // Predicated region
        $region13: #{tpu_custom_call.1} parent=11 // pred_check
          %p127 = pneg %p60
        $region14: #{tpu_custom_call.1} parent=11 // pred_check_branch
          %129 = sbr.rel (%p127) target = $region16
        $region15: #{tpu_custom_call.1} parent=11 // pred_region
          _
        $region16: #{tpu_custom_call.1} parent=11 // pred_fallthru
          _
      $region12: #{tpu_custom_call.1} parent=5 // pred_fallthru
        _
      %p130 = scmp.lt.s32.totalorder %s13, 2
      // Predicated region
      $region17: #{tpu_custom_call.1} parent=5 // pred_check
        %p131 = pneg %p130
      $region18: #{tpu_custom_call.1} parent=5 // pred_check_branch
        %133 = sbr.rel (%p131) target = $region20
      $region19: #{tpu_custom_call.1} parent=5 // pred_region
        // Predicated region
        $region21: #{tpu_custom_call.1} parent=19 // pred_check
          %p134 = pneg %p33
        $region22: #{tpu_custom_call.1} parent=19 // pred_check_branch
          %136 = sbr.rel (%p134) target = $region24
        $region23: #{tpu_custom_call.1} parent=19 // pred_region
          %s137 = smul.u32 8, %s13
          %p138 = scmp.lt.s32.totalorder %s137, 15
          %s139 = scalar_select %p138, %s137, 15
          %s140 = smul.addr %s139, 8
          %s141 = scalar_lea.vmem %s0, %s140
          %s142 = smul.u32 8, %s13
        $region24: #{tpu_custom_call.1} parent=19 // pred_fallthru
          _
      $region20: #{tpu_custom_call.1} parent=5 // pred_fallthru
        _
      %p143 = scmp.le.s32.totalorder 1, %s13
      %p144 = scmp.lt.s32.totalorder %s13, 3
      %p145 = pnand %p143, %p144
      %p146 = pneg %p145
      // Predicated region
      $region25: #{tpu_custom_call.1} parent=5 // pred_check
        _
      $region26: #{tpu_custom_call.1} parent=5 // pred_check_branch
        %148 = sbr.rel (%p145) target = $region28
      $region27: #{tpu_custom_call.1} parent=5 // pred_region
        %s149 = ssub.s32 %s13, 1
        %s150 = smul.u32 8, %s18
        %p151 = scmp.lt.s32.totalorder %s150, 15
        %s152 = scalar_select %p151, %s150, 15
        %s153 = smul.addr %s152, 8
        %s154 = scalar_lea.vmem %s0, %s153
        %p155 = pneg %p39
        %p156 = pneg %p36
        %p157 = pneg %p60
        %p158 = pneg %p57
        %p159 = pneg %p86
        %p160 = pneg %p83
        %s161 = smul.u32 8, %s18
        %p162 = scmp.lt.s32.totalorder %s161, 15
        %s163 = scalar_select %p162, %s161, 15
        %s164 = smul.addr %s163, 8
        %s165 = scalar_lea.vmem %s2, %s164
        %p166 = pneg %p112
        %p167 = pneg %p109
        %s168 = sand.u32 %s99, 1
        %s169 = scalar_lea.sflag [#allocation3], %s168
        %s170 = sand.u32 %s99, 1
        %s171 = smul.addr %s170, 2
        %s172 = scalar_lea.vmem [#allocation2], %s171
        %s173 = smul.u32 8, %s18
        %p174 = scmp.lt.s32.totalorder %s173, 15
        %s175 = scalar_select %p174, %s173, 15
        %s176 = smul.addr %s175, 8
        %s177 = scalar_lea.vmem %s0, %s176
        %s178 = smul.u32 8, %s18
        %s179 = smul.u32 8, %s18
        %p180 = scmp.lt.s32.totalorder %s179, 15
        %s181 = scalar_select %p180, %s179, 15
        %s182 = smul.addr %s181, 8
        %s183 = scalar_lea.vmem %s2, %s182
        %s184 = smul.u32 8, %s18
        %v185 = vld [vmem:[%s177] sm:$0xff]
        %v186 = vld [vmem:[%s177 + $0x8] sm:$0xff]
        %v187 = vld [vmem:[%s177 + $0x10] sm:$0xff]
        %v188 = vld [vmem:[%s177 + $0x18] sm:$0xff]
        %v189 = vld [vmem:[%s177 + $0x20] sm:$0xff]
        %v190 = vld [vmem:[%s177 + $0x28] sm:$0xff]
        %v191 = vld [vmem:[%s177 + $0x30] sm:$0xff]
        %v192 = vld [vmem:[%s177 + $0x38] sm:$0xff]
        %v193 = vld [vmem:[%s1] sm:$0xff]
        %vm194 = vcmask 64512
        %v196 = vsel %vm194, %v185, 0
        %v199 = vsel %vm194, %v186, 0
        %v202 = vsel %vm194, %v187, 0
        %v205 = vsel %vm194, %v188, 0
        %v208 = vsel %vm194, %v189, 0
        %v211 = vsel %vm194, %v190, 0
        %v214 = vsel %vm194, %v191, 0
        %v217 = vsel %vm194, %v192, 0
        %219 = vmatprep.subr.mxu0 0.0
        %220 = vmatpush1.msra.mxu0 %v193
        %221 = vmatprep.subr.mxu0 0.0
        %222 = vmatpush1.msra.mxu0 0.0
        %223 = vmatprep.subr.mxu0 0.0
        %224 = vmatpush1.msra.mxu0 0.0
        %225 = vmatprep.subr.mxu0 0.0
        %226 = vmatpush1.msra.mxu0 0.0
        %227 = vmatprep.subr.mxu0 0.0
        %228 = vmatpush1.msra.mxu0 0.0
        %229 = vmatprep.subr.mxu0 0.0
        %230 = vmatpush1.msra.mxu0 0.0
        %231 = vmatprep.subr.mxu0 0.0
        %232 = vmatpush1.msra.mxu0 0.0
        %233 = vmatprep.subr.mxu0 0.0
        %234 = vmatpush1.msra.mxu0 0.0
        %235 = vmatprep.subr.mxu0 0.0
        %236 = vmatpush1.msra.mxu0 0.0
        %237 = vmatprep.subr.mxu0 0.0
        %238 = vmatpush1.msra.mxu0 0.0
        %239 = vmatprep.subr.mxu0 0.0
        %240 = vmatpush1.msra.mxu0 0.0
        %241 = vmatprep.subr.mxu0 0.0
        %242 = vmatpush1.msra.mxu0 0.0
        %243 = vmatprep.subr.mxu0 0.0
        %244 = vmatpush1.msra.mxu0 0.0
        %245 = vmatprep.subr.mxu0 0.0
        %246 = vmatpush1.msra.mxu0 0.0
        %247 = vmatprep.subr.mxu0 0.0
        %248 = vmatpush1.msra.mxu0 0.0
        %249 = vmatprep.subr.mxu0 0.0
        %250 = vmatpush1.msra.mxu0 0.0
        %251 = vmatprep.subr.mxu0 0.0
        %252 = vmatpush1.msra.mxu0 0.0
        %253 = vmatprep.subr.mxu0 0.0
        %254 = vmatpush1.msra.mxu0 0.0
        %255 = vmatprep.subr.mxu0 0.0
        %256 = vmatpush1.msra.mxu0 0.0
        %257 = vmatprep.subr.mxu0 0.0
        %258 = vmatpush1.msra.mxu0 0.0
        %259 = vmatprep.subr.mxu0 0.0
        %260 = vmatpush1.msra.mxu0 0.0
        %261 = vmatprep.subr.mxu0 0.0
        %262 = vmatpush1.msra.mxu0 0.0
        %263 = vmatprep.subr.mxu0 0.0
        %264 = vmatpush1.msra.mxu0 0.0
        %265 = vmatprep.subr.mxu0 0.0
        %266 = vmatpush1.msra.mxu0 0.0
        %267 = vmatprep.subr.mxu0 0.0
        %268 = vmatpush1.msra.mxu0 0.0
        %269 = vmatprep.subr.mxu0 0.0
        %270 = vmatpush1.msra.mxu0 0.0
        %271 = vmatprep.subr.mxu0 0.0
        %272 = vmatpush1.msra.mxu0 0.0
        %273 = vmatprep.subr.mxu0 0.0
        %274 = vmatpush1.msra.mxu0 0.0
        %275 = vmatprep.subr.mxu0 0.0
        %276 = vmatpush1.msra.mxu0 0.0
        %277 = vmatprep.subr.mxu0 0.0
        %278 = vmatpush1.msra.mxu0 0.0
        %279 = vmatprep.subr.mxu0 0.0
        %280 = vmatpush1.msra.mxu0 0.0
        %281 = vmatprep.subr.mxu0 0.0
        %282 = vmatpush1.msra.mxu0 0.0
        %283 = vmatprep.mubr.f32.mxu0 0.0
        %284 = vmatmul.mubr.f32.gmra.mrb[0].mxu0 %v196
        %v285 = vpop.f32.mrb[0].mxu0
        %v286 = vadd.f32 0.0, %v285
        %v287 = vpop.f32.mrb[0].mxu0
        %288 = vmatprep.mubr.f32.mxu0 0.0
        %289 = vmatmul.mubr.f32.gmra.mrb[0].mxu0 %v199
        %v290 = vpop.f32.mrb[0].mxu0
        %v291 = vadd.f32 0.0, %v290
        %v292 = vpop.f32.mrb[0].mxu0
        %293 = vmatprep.mubr.f32.mxu0 0.0
        %294 = vmatmul.mubr.f32.gmra.mrb[0].mxu0 %v202
        %v295 = vpop.f32.mrb[0].mxu0
        %v296 = vadd.f32 0.0, %v295
        %v297 = vpop.f32.mrb[0].mxu0
        %298 = vmatprep.mubr.f32.mxu0 0.0
        %299 = vmatmul.mubr.f32.gmra.mrb[0].mxu0 %v205
        %v300 = vpop.f32.mrb[0].mxu0
        %v301 = vadd.f32 0.0, %v300
        %v302 = vpop.f32.mrb[0].mxu0
        %303 = vmatprep.mubr.f32.mxu0 0.0
        %304 = vmatmul.mubr.f32.gmra.mrb[0].mxu0 %v208
        %v305 = vpop.f32.mrb[0].mxu0
        %v306 = vadd.f32 0.0, %v305
        %v307 = vpop.f32.mrb[0].mxu0
        %308 = vmatprep.mubr.f32.mxu0 0.0
        %309 = vmatmul.mubr.f32.gmra.mrb[0].mxu0 %v211
        %v310 = vpop.f32.mrb[0].mxu0
        %v311 = vadd.f32 0.0, %v310
        %v312 = vpop.f32.mrb[0].mxu0
        %313 = vmatprep.mubr.f32.mxu0 0.0
        %314 = vmatmul.mubr.f32.gmra.mrb[0].mxu0 %v214
        %v315 = vpop.f32.mrb[0].mxu0
        %v316 = vadd.f32 0.0, %v315
        %v317 = vpop.f32.mrb[0].mxu0
        %318 = vmatprep.mubr.f32.mxu0 0.0
        %319 = vmatmul.mubr.f32.gmra.mrb[0].mxu0 %v217
        %v320 = vpop.f32.mrb[0].mxu0
        %v321 = vadd.f32 0.0, %v320
        %v322 = vpop.f32.mrb[0].mxu0
        %323 = vdwg.mxu0
        %vm324 = vcmask 15360
        %325 = vst.msk [vmem:[%s183] sm:$0xff] %vm324, %v286
        %326 = vst.msk [vmem:[%s183 + $0x8] sm:$0xff] %vm324, %v291
        %327 = vst.msk [vmem:[%s183 + $0x10] sm:$0xff] %vm324, %v296
        %328 = vst.msk [vmem:[%s183 + $0x18] sm:$0xff] %vm324, %v301
        %329 = vst.msk [vmem:[%s183 + $0x20] sm:$0xff] %vm324, %v306
        %330 = vst.msk [vmem:[%s183 + $0x28] sm:$0xff] %vm324, %v311
        %331 = vst.msk [vmem:[%s183 + $0x30] sm:$0xff] %vm324, %v316
        %332 = vst.msk [vmem:[%s183 + $0x38] sm:$0xff] %vm324, %v321
        %v333 = vsel %vm324, %v286, 0.0
        %v334 = vsel %vm324, %v291, 0.0
        %v335 = vadd.f32 %v333, %v334
        %v336 = vsel %vm324, %v296, 0.0
        %v337 = vadd.f32 %v335, %v336
        %v338 = vsel %vm324, %v301, 0.0
        %v339 = vadd.f32 %v337, %v338
        %v340 = vsel %vm324, %v306, 0.0
        %v341 = vadd.f32 %v339, %v340
        %v342 = vsel %vm324, %v311, 0.0
        %v343 = vadd.f32 %v341, %v342
        %v344 = vsel %vm324, %v316, 0.0
        %v345 = vadd.f32 %v343, %v344
        %v346 = vsel %vm324, %v321, 0.0
        %v347 = vadd.f32 %v345, %v346
        %v348 = vrot.slane %v347, 4
        %v349 = vadd.f32 %v347, %v348
        %v350 = vrot.slane %v349, 2
        %v351 = vadd.f32 %v349, %v350
        %v352 = vrot.slane %v351, 1
        %v353 = vadd.f32 %v351, %v352
        %v354 = vmul.f32 %v286, %v286
        %v355 = vmul.f32 %v291, %v291
        %v356 = vmul.f32 %v296, %v296
        %v357 = vmul.f32 %v301, %v301
        %v358 = vmul.f32 %v306, %v306
        %v359 = vmul.f32 %v311, %v311
        %v360 = vmul.f32 %v316, %v316
        %v361 = vmul.f32 %v321, %v321
        %v362 = vsel %vm324, %v354, 0.0
        %v363 = vsel %vm324, %v355, 0.0
        %v364 = vadd.f32 %v362, %v363
        %v365 = vsel %vm324, %v356, 0.0
        %v366 = vadd.f32 %v364, %v365
        %v367 = vsel %vm324, %v357, 0.0
        %v368 = vadd.f32 %v366, %v367
        %v369 = vsel %vm324, %v358, 0.0
        %v370 = vadd.f32 %v368, %v369
        %v371 = vsel %vm324, %v359, 0.0
        %v372 = vadd.f32 %v370, %v371
        %v373 = vsel %vm324, %v360, 0.0
        %v374 = vadd.f32 %v372, %v373
        %v375 = vsel %vm324, %v361, 0.0
        %v376 = vadd.f32 %v374, %v375
        %v377 = vrot.slane %v376, 4
        %v378 = vadd.f32 %v376, %v377
        %v379 = vrot.slane %v378, 2
        %v380 = vadd.f32 %v378, %v379
        %v381 = vrot.slane %v380, 1
        %v382 = vadd.f32 %v380, %v381
        %vm383 = vcmask 1040384
        %v384 = vsel %vm383, %v353, %v382
        %vm385 = vcmask 9216
        %386 = vst.msk [vmem:[%s172] sm:$0x3] %vm385, %v384
        %s387 = smul.u32 8, %s18
        %p388 = scmp.lt.s32.totalorder %s387, 15
        %s389 = scalar_select %p388, %s387, 15
        %s390 = smul.addr %s389, 8
        %s391 = scalar_lea.vmem %s2, %s390
        %s392 = sand.u32 %s99, 1
        %s393 = scalar_lea.sflag [#allocation3], %s392
        %s394 = sand.u32 %s99, 1
        %s395 = smul.addr %s394, 2
        %s396 = scalar_lea.vmem [#allocation2], %s395
        // Predicated region
        $region29: #{tpu_custom_call.1} parent=27 // pred_check
          %p397 = pneg %p83
        $region30: #{tpu_custom_call.1} parent=27 // pred_check_branch
          %399 = sbr.rel (%p397) target = $region32
        $region31: #{tpu_custom_call.1} parent=27 // pred_region
          %s400 = smul.u32 8, %s18
        $region32: #{tpu_custom_call.1} parent=27 // pred_fallthru
          _
        // Predicated region
        $region33: #{tpu_custom_call.1} parent=27 // pred_check
          %p401 = pneg %p109
        $region34: #{tpu_custom_call.1} parent=27 // pred_check_branch
          %403 = sbr.rel (%p401) target = $region36
        $region35: #{tpu_custom_call.1} parent=27 // pred_region
          %s405 = ssub.s32 32, 32
          %406 = vsyncadd %s393, %s405
          %s407 = smul.addr %s18, 32
          %s408 = scalar_lea.hbm %s3, %s407
          %s410 = sshll.u32 %s396, 4
          %s411 = int_to_ptr.vmem [resolvable:$true] %s410
          %413 = dma.vmem_to_hbm [thread:$0]  %s411, 32, %s408, %s393
        $region36: #{tpu_custom_call.1} parent=27 // pred_fallthru
          _
      $region28: #{tpu_custom_call.1} parent=5 // pred_fallthru
        _
      %p414 = scmp.le.s32.totalorder 2, %s13
      // Predicated region
      $region37: #{tpu_custom_call.1} parent=5 // pred_check
        %p415 = pneg %p414
      $region38: #{tpu_custom_call.1} parent=5 // pred_check_branch
        %417 = sbr.rel (%p415) target = $region40
      $region39: #{tpu_custom_call.1} parent=5 // pred_region
        %s418 = ssub.s32 %s13, 2
        // Predicated region
        $region41: #{tpu_custom_call.1} parent=39 // pred_check
          %p419 = pneg %p89
        $region42: #{tpu_custom_call.1} parent=39 // pred_check_branch
          %421 = sbr.rel (%p419) target = $region44
        $region43: #{tpu_custom_call.1} parent=39 // pred_region
          %s422 = smul.u32 8, %s19
          %p423 = scmp.lt.s32.totalorder %s422, 15
          %s424 = scalar_select %p423, %s422, 15
          %s425 = smul.addr %s424, 8
          %s426 = scalar_lea.vmem %s2, %s425
        $region44: #{tpu_custom_call.1} parent=39 // pred_fallthru
          _
        // Predicated region
        $region45: #{tpu_custom_call.1} parent=39 // pred_check
          %p427 = pneg %p115
        $region46: #{tpu_custom_call.1} parent=39 // pred_check_branch
          %429 = sbr.rel (%p427) target = $region48
        $region47: #{tpu_custom_call.1} parent=39 // pred_region
          %s430 = sand.u32 %s100, 1
          %s431 = scalar_lea.sflag [#allocation3], %s430
          %s432 = sand.u32 %s100, 1
          %s433 = smul.addr %s432, 2
          %s434 = scalar_lea.vmem [#allocation2], %s433
          %435 = dma.done %s431, 32
        $region48: #{tpu_custom_call.1} parent=39 // pred_fallthru
          _
      $region40: #{tpu_custom_call.1} parent=5 // pred_fallthru
        _
    $region6: #{tpu_custom_call.1} parent=1 // loop_footer
      %s17 = sadd.s32 1, %s13
    $region7: #{tpu_custom_call.1} parent=1 // loop_footer_branch
      %12 = sbr.rel target = $region3
    $region8: #{tpu_custom_call.1} parent=1 // loop_exit
      _
    %436 = vsyncpa [#allocation3], 1
    %s437 = scalar_lea.sflag [#allocation3], 1
    %438 = vsyncpa %s437, 1

</llo_original>
